<compile_context>
chip_gen: v7x
topology: tpu7x:2x2x1
jax: 0.10.0
libtpu: 0.0.40
codegen_flags: <defaults>
</compile_context>

<pallas_src>
import functools

import jax
import jax.numpy as jnp
from jax import lax
from jax.experimental import pallas as pl
from jax.experimental.pallas import tpu as pltpu


def _lrelu(v, slope):
    return jnp.where(v > 0, v, slope * v)


# ---------- pass 1: conv1 (im2col, one MXU matmul) + BN1 partial stats ----------
def _conv1_stats_kernel(xpad_ref, w_ref, y_ref, st_ref, *, L, K):
    # xpad_ref: (L + K - 1, C) zero-padded rows of this batch element (channels-last)
    cols = jnp.concatenate([xpad_ref[k:k + L, :] for k in range(K)], axis=1)   # (L, K*C)
    y = jnp.dot(cols, w_ref[...], preferred_element_type=jnp.float32)          # (L, C)
    y_ref[...] = y
    # per-batch partial [sum, sum-of-squares]; reduced to mean/var in the wrapper
    st_ref[0:1, :] = jnp.sum(y, axis=0, keepdims=True)
    st_ref[1:2, :] = jnp.sum(y * y, axis=0, keepdims=True)


# ---------- pass 2: BN1 + LeakyReLU + conv2 + BN2 partial stats ----------
def _bn1_conv2_stats_kernel(y1_ref, bn1_ref, w_ref, z_ref, st_ref, padbuf,
                            *, L, K, pad, slope):
    C = y1_ref.shape[1]
    scale = bn1_ref[0:1, :]
    shift = bn1_ref[1:2, :]
    y = _lrelu(y1_ref[...] * scale + shift, slope)

    # zero only the halo rows, write the activation directly into the interior
    if pad > 0:
        padbuf[0:pad, :] = jnp.zeros((pad, C), jnp.float32)
        padbuf[pad + L:, :] = jnp.zeros((pad, C), jnp.float32)
    padbuf[pad:pad + L, :] = y

    cols = jnp.concatenate([padbuf[k:k + L, :] for k in range(K)], axis=1)      # (L, K*C)
    z = jnp.dot(cols, w_ref[...], preferred_element_type=jnp.float32)           # (L, C)
    z_ref[...] = z
    st_ref[0:1, :] = jnp.sum(z, axis=0, keepdims=True)
    st_ref[1:2, :] = jnp.sum(z * z, axis=0, keepdims=True)


# ---------- pass 3: BN2 + residual + LeakyReLU + fused MaxPool1d(2) ----------
def _bn2_res_pool_kernel(z_ref, xpad_ref, bn2_ref, out_ref, *, L, pad, slope):
    half = L // 2
    scale = bn2_ref[0:1, :]
    shift = bn2_ref[1:2, :]
    # stride-2 even/odd row loads -> pool computed in-register (no extra slab store)
    z_e = z_ref[pl.ds(0, half, stride=2), :]
    z_o = z_ref[pl.ds(1, half, stride=2), :]
    x_e = xpad_ref[pl.ds(pad, half, stride=2), :]       # residual from interior of xpad
    x_o = xpad_ref[pl.ds(pad + 1, half, stride=2), :]
    w_e = _lrelu(z_e * scale + shift + x_e, slope)
    w_o = _lrelu(z_o * scale + shift + x_o, slope)
    out_ref[...] = jnp.maximum(w_e, w_o)


def _bn_affine(partial_stats, gamma, beta, count, eps):
    """Reduce per-batch [sum, sumsq] partials to a fused BN scale/shift (2, C)."""
    tot = jnp.sum(partial_stats, axis=0)                      # (2, C)
    mean = tot[0] / count
    var = jnp.maximum(tot[1] / count - mean * mean, 0.0)      # biased, training-mode
    scale = gamma * lax.rsqrt(var + eps)
    shift = beta - mean * scale
    return jnp.stack([scale, shift], axis=0).astype(jnp.float32)


def downblock_forward(x, params, *, kernel_size=3, eps=1e-5, slope=0.01):
    """x: (N, C, L) float32 (PyTorch NCL). Returns (N, C, L//2)."""
    N, C, L = x.shape
    K = kernel_size
    pad = (K - 1) // 2
    Lp = L + 2 * pad
    assert L % 2 == 0

    xt = jnp.transpose(x, (0, 2, 1))                       # (N, L, C) channels-last
    xpad = jnp.pad(xt, ((0, 0), (pad, pad), (0, 0)))       # (N, Lp, C); also carries the residual

    # PyTorch conv weight (Cout, Cin, K) -> im2col matrix (K*Cin, Cout), k-major/c-minor
    w1 = jnp.transpose(params["conv1_w"], (2, 1, 0)).reshape(K * C, C)
    w2 = jnp.transpose(params["conv2_w"], (2, 1, 0)).reshape(K * C, C)
    # conv biases intentionally unused: training-mode BN exactly cancels them.

    cp = pltpu.CompilerParams(dimension_semantics=("parallel",),
                              vmem_limit_bytes=32 * 1024 * 1024)

    def batch_in(shape):
        return pl.BlockSpec(shape, lambda n: (n, 0, 0))

    def const_in(shape):
        return pl.BlockSpec(shape, lambda n: (0, 0))

    # ---- pass 1: conv1 + BN1 partial stats ----
    y1, st1 = pl.pallas_call(
        functools.partial(_conv1_stats_kernel, L=L, K=K),
        grid=(N,),
        in_specs=[batch_in((None, Lp, C)), const_in((K * C, C))],
        out_specs=(batch_in((None, L, C)), batch_in((None, 2, C))),
        out_shape=(jax.ShapeDtypeStruct((N, L, C), jnp.float32),
                   jax.ShapeDtypeStruct((N, 2, C), jnp.float32)),
        compiler_params=cp,
    )(xpad, w1)

    bn1_affine = _bn_affine(st1, params["bn1_w"], params["bn1_b"], N * L, eps)

    # ---- pass 2: BN1 + LReLU + conv2 + BN2 partial stats ----
    z, st2 = pl.pallas_call(
        functools.partial(_bn1_conv2_stats_kernel, L=L, K=K, pad=pad, slope=slope),
        grid=(N,),
        in_specs=[batch_in((None, L, C)), const_in((2, C)), const_in((K * C, C))],
        out_specs=(batch_in((None, L, C)), batch_in((None, 2, C))),
        out_shape=(jax.ShapeDtypeStruct((N, L, C), jnp.float32),
                   jax.ShapeDtypeStruct((N, 2, C), jnp.float32)),
        scratch_shapes=[pltpu.VMEM((Lp, C), jnp.float32)],
        compiler_params=cp,
    )(y1, bn1_affine, w2)

    bn2_affine = _bn_affine(st2, params["bn2_w"], params["bn2_b"], N * L, eps)

    # ---- pass 3: BN2 + residual + LReLU + maxpool(2) ----
    out_nlc = pl.pallas_call(
        functools.partial(_bn2_res_pool_kernel, L=L, pad=pad, slope=slope),
        grid=(N,),
        in_specs=[batch_in((None, L, C)), batch_in((None, Lp, C)), const_in((2, C))],
        out_specs=batch_in((None, L // 2, C)),
        out_shape=jax.ShapeDtypeStruct((N, L // 2, C), jnp.float32),
        compiler_params=cp,
    )(z, xpad, bn2_affine)

    return jnp.transpose(out_nlc, (0, 2, 1))               # (N, C, L//2)


def downblock_ref(x, params, *, kernel_size=3, eps=1e-5, slope=0.01):
    """Pure-JAX reference matching the PyTorch forward (training-mode BN, with conv biases)."""
    pad = (kernel_size - 1) // 2

    def conv1d(v, w, b):
        o = lax.conv_general_dilated(v, w, window_strides=(1,),
                                     padding=[(pad, pad)],
                                     dimension_numbers=("NCH", "OIH", "NCH"))
        return o + b[None, :, None]

    def bn(v, g, be):
        m = jnp.mean(v, axis=(0, 2), keepdims=True)
        va = jnp.mean((v - m) ** 2, axis=(0, 2), keepdims=True)
        return (v - m) / jnp.sqrt(va + eps) * g[None, :, None] + be[None, :, None]

    def lrelu(v):
        return jnp.where(v > 0, v, slope * v)

    x1 = lrelu(bn(conv1d(x, params["conv1_w"], params["conv1_b"]),
                  params["bn1_w"], params["bn1_b"]))
    x1 = bn(conv1d(x1, params["conv2_w"], params["conv2_b"]),
            params["bn2_w"], params["bn2_b"]) + x
    x1 = lrelu(x1)
    N, C, L = x1.shape
    return x1.reshape(N, C, L // 2, 2).max(axis=-1)


if __name__ == "__main__":
    N, C, L, K = 2, 4, 16, 3
    key = jax.random.PRNGKey(0)
    keys = jax.random.split(key, 9)

    x = jax.random.normal(keys[0], (N, C, L), jnp.float32)
    params = {
        "conv1_w": 0.3 * jax.random.normal(keys[1], (C, C, K), jnp.float32),
        "conv1_b": 0.1 * jax.random.normal(keys[2], (C,), jnp.float32),
        "conv2_w": 0.3 * jax.random.normal(keys[3], (C, C, K), jnp.float32),
        "conv2_b": 0.1 * jax.random.normal(keys[4], (C,), jnp.float32),
        "bn1_w": 1.0 + 0.1 * jax.random.normal(keys[5], (C,), jnp.float32),
        "bn1_b": 0.1 * jax.random.normal(keys[6], (C,), jnp.float32),
        "bn2_w": 1.0 + 0.1 * jax.random.normal(keys[7], (C,), jnp.float32),
        "bn2_b": 0.1 * jax.random.normal(keys[8], (C,), jnp.float32),
    }

    out = jax.block_until_ready(downblock_forward(x, params, kernel_size=K))
    ref = downblock_ref(x, params, kernel_size=K)

    assert out.shape == (N, C, L // 2), out.shape
    assert jnp.allclose(out, ref, rtol=1e-4, atol=1e-4), float(jnp.max(jnp.abs(out - ref)))
    print("KERNEL_OK")
</pallas_src>

<mosaic_0001>
module attributes {stable_mosaic.version = 11 : i64} {
  func.func @_conv1_stats_kernel(%arg0: i32, %arg1: memref<1x18x4xf32, #tpu.memory_space<vmem>>, %arg2: memref<12x4xf32, #tpu.memory_space<vmem>>, %arg3: memref<1x16x4xf32, #tpu.memory_space<vmem>>, %arg4: memref<1x2x4xf32, #tpu.memory_space<vmem>>) attributes {dimension_semantics = [#tpu.dimension_semantics<parallel>], iteration_bounds = array<i64: 2>, scalar_prefetch = 0 : i64, scratch_operands = 0 : i64, tpu.core_type = #tpu.core_type<tc>, window_params = [{transform_indices = @transform_0, window_bounds = array<i64: 1, 18, 4>}, {pipeline_mode = #tpu.pipeline_mode<synchronous>, transform_indices = @transform_1, window_bounds = array<i64: 12, 4>}, {transform_indices = @transform_2, window_bounds = array<i64: 1, 16, 4>}, {transform_indices = @transform_3, window_bounds = array<i64: 1, 2, 4>}]} {
    %c0 = arith.constant 0 : index
    %c0_0 = arith.constant 0 : index
    %c0_1 = arith.constant 0 : index
    %0 = vector.load %arg1[%c0, %c0_0, %c0_1] : memref<1x18x4xf32, #tpu.memory_space<vmem>>, vector<1x16x4xf32>
    %1 = vector.shape_cast %0 : vector<1x16x4xf32> to vector<16x4xf32>
    %c0_2 = arith.constant 0 : index
    %c1 = arith.constant 1 : index
    %c0_3 = arith.constant 0 : index
    %2 = vector.load %arg1[%c0_2, %c1, %c0_3] : memref<1x18x4xf32, #tpu.memory_space<vmem>>, vector<1x16x4xf32>
    %3 = vector.shape_cast %2 : vector<1x16x4xf32> to vector<16x4xf32>
    %c0_4 = arith.constant 0 : index
    %c2 = arith.constant 2 : index
    %c0_5 = arith.constant 0 : index
    %4 = vector.load %arg1[%c0_4, %c2, %c0_5] : memref<1x18x4xf32, #tpu.memory_space<vmem>>, vector<1x16x4xf32>
    %5 = vector.shape_cast %4 : vector<1x16x4xf32> to vector<16x4xf32>
    %6 = tpu.concatenate %1, %3, %5 in 1 : vector<16x4xf32>, vector<16x4xf32>, vector<16x4xf32> -> vector<16x12xf32>
    %c0_6 = arith.constant 0 : index
    %c0_7 = arith.constant 0 : index
    %7 = vector.load %arg2[%c0_6, %c0_7] : memref<12x4xf32, #tpu.memory_space<vmem>>, vector<12x4xf32>
    %cst = arith.constant dense<0.000000e+00> : vector<16x4xf32>
    %8 = tpu.matmul %6, %7, %cst {dimension_numbers = #tpu.dot_dimension_numbers<[1], [0], [0], [1], [0, 0, 1, 1], [], []>} : vector<16x12xf32>, vector<12x4xf32>, vector<16x4xf32> -> vector<16x4xf32>
    %c0_8 = arith.constant 0 : index
    %c0_9 = arith.constant 0 : index
    %c0_10 = arith.constant 0 : index
    %9 = vector.load %arg3[%c0_8, %c0_9, %c0_10] : memref<1x16x4xf32, #tpu.memory_space<vmem>>, vector<1x16x4xf32>
    %10 = vector.shape_cast %9 : vector<1x16x4xf32> to vector<16x4xf32>
    %11 = vector.shape_cast %8 : vector<16x4xf32> to vector<1x16x4xf32>
    tpu.vector_store %arg3[%c0_8, %c0_9, %c0_10], %11 {strides = array<i32>} : memref<1x16x4xf32, #tpu.memory_space<vmem>>, vector<1x16x4xf32>,
    %cst_11 = arith.constant dense<0.000000e+00> : vector<4xf32>
    %12 = vector.multi_reduction <add>, %8, %cst_11 [0] : vector<16x4xf32> to vector<4xf32>
    %13 = vector.shape_cast %12 : vector<4xf32> to vector<1x4xf32>
    %c0_12 = arith.constant 0 : index
    %c0_13 = arith.constant 0 : index
    %c0_14 = arith.constant 0 : index
    %14 = vector.load %arg4[%c0_12, %c0_13, %c0_14] : memref<1x2x4xf32, #tpu.memory_space<vmem>>, vector<1x1x4xf32>
    %15 = vector.shape_cast %14 : vector<1x1x4xf32> to vector<1x4xf32>
    %16 = vector.shape_cast %13 : vector<1x4xf32> to vector<1x1x4xf32>
    tpu.vector_store %arg4[%c0_12, %c0_13, %c0_14], %16 {strides = array<i32>} : memref<1x2x4xf32, #tpu.memory_space<vmem>>, vector<1x1x4xf32>,
    %17 = arith.mulf %8, %8 : vector<16x4xf32>
    %cst_15 = arith.constant dense<0.000000e+00> : vector<4xf32>
    %18 = vector.multi_reduction <add>, %17, %cst_15 [0] : vector<16x4xf32> to vector<4xf32>
    %19 = vector.shape_cast %18 : vector<4xf32> to vector<1x4xf32>
    %c0_16 = arith.constant 0 : index
    %c1_17 = arith.constant 1 : index
    %c0_18 = arith.constant 0 : index
    %20 = vector.load %arg4[%c0_16, %c1_17, %c0_18] : memref<1x2x4xf32, #tpu.memory_space<vmem>>, vector<1x1x4xf32>
    %21 = vector.shape_cast %20 : vector<1x1x4xf32> to vector<1x4xf32>
    %22 = vector.shape_cast %19 : vector<1x4xf32> to vector<1x1x4xf32>
    tpu.vector_store %arg4[%c0_16, %c1_17, %c0_18], %22 {strides = array<i32>} : memref<1x2x4xf32, #tpu.memory_space<vmem>>, vector<1x1x4xf32>,
    return
  }
  func.func @transform_0(%arg0: i32) -> (i32, i32, i32) {
    %c0_i32 = arith.constant 0 : i32
    %c0_i32_0 = arith.constant 0 : i32
    %c0_i32_1 = arith.constant 0 : i32
    return %arg0, %c0_i32, %c0_i32_0 : i32, i32, i32
  }
  func.func @transform_1(%arg0: i32) -> (i32, i32) {
    %c0_i32 = arith.constant 0 : i32
    %c0_i32_0 = arith.constant 0 : i32
    %c0_i32_1 = arith.constant 0 : i32
    return %c0_i32, %c0_i32_0 : i32, i32
  }
  func.func @transform_2(%arg0: i32) -> (i32, i32, i32) {
    %c0_i32 = arith.constant 0 : i32
    %c0_i32_0 = arith.constant 0 : i32
    %c0_i32_1 = arith.constant 0 : i32
    return %arg0, %c0_i32, %c0_i32_0 : i32, i32, i32
  }
  func.func @transform_3(%arg0: i32) -> (i32, i32, i32) {
    %c0_i32 = arith.constant 0 : i32
    %c0_i32_0 = arith.constant 0 : i32
    %c0_i32_1 = arith.constant 0 : i32
    return %arg0, %c0_i32, %c0_i32_0 : i32, i32, i32
  }
}

</mosaic_0001>

<llo_original>
// kernel: tpu_custom_call.1
$region0: #{tpu_custom_call.1}
  #allocation0 [shape = 'u32[]', space=smem, size = 0x4, offset = 0x4, fixed_abs, tag = 'smem constant byte address 0x4 - core index']
  #allocation1 [shape = 'u32[144,128]{1,0:T(1,128)}', space=vmem, size = 0x12000, scoped, tag = 'internal scratch']
  %s0 = inlined_call_operand.vmem [shape: f32[2,18,4], index: 0, kind: input, shape index: {}]
  %s1 = inlined_call_operand.vmem [shape: f32[12,4], index: 1, kind: input, shape index: {}]
  %s2 = inlined_call_operand.vmem [shape: f32[2,16,4], index: 2, kind: output, shape index: {0}]
  %s3 = inlined_call_operand.hbm [shape: f32[2,2,4], index: 3, kind: output, shape index: {1}]
  %4 = xla_tuple %s2, %s3
  %s5 = sld [smem:[#allocation0]]
  $region49: #{tpu_custom_call.1} parent=0
    _
  %s7 = ssub.s32 1, %s5
  %s8 = scalar_select 0, %s7, %s5
  $region1: #{tpu_custom_call.1} parent=0
    #allocation2 [shape = 'u8[2048]{0}', space=vmem, size = 0x800, scoped, tag = 'output window, operand 1']
    #allocation3 [shape = 's32[2]{0}', space=sflag, size = 0x8, scoped, tag = 'scoped memory for tpu_custom_call.1']
    %9 = vsyncpa [#allocation3], 0
    %s10 = scalar_lea.sflag [#allocation3], 1
    %11 = vsyncpa %s10, 0
    loop: start=0, step=1, limit=4
    $region2: #{tpu_custom_call.1} parent=1 // loop_pre_header
      _
    $region3: #{tpu_custom_call.1} parent=1 // loop_header
      %s13 = sphi 0, %s17
      %p14 = scmp.ge.s32.totalorder %s13, 4
      %s23 = sphi 0, %s25
      %s26 = sphi 0, %s23
      %s27 = sphi 0, %s26
      %s43 = sphi 0, %s27
      %s47 = sphi 0, %s47
      %s49 = sphi 0, %s47
      %s50 = sphi 0, %s49
      %s64 = sphi 0, %s50
      %s70 = sphi 0, %s72
      %s73 = sphi 0, %s70
      %s74 = sphi 0, %s73
      %s90 = sphi 0, %s74
      %s96 = sphi 0, %s98
      %s99 = sphi 0, %s96
      %s100 = sphi 0, %s99
      %s116 = sphi 0, %s100
    $region4: #{tpu_custom_call.1} parent=1 // loop_header_branch
      %16 = sbr.rel (%p14) target = $region8
    $region5: #{tpu_custom_call.1} parent=1 // loop_body
      %s18 = ssub.s32 %s13, 1
      %s19 = ssub.s32 %s13, 2
      %s20 = sadd.s32 %s13, 1
      %s21 = ssub.s32 %s13, %s20
      %p22 = scmp.eq.s32.totalorder %s21, 0
      %s24 = sadd.s32 %s23, 1
      %s25 = scalar_select %p22, %s23, %s24
      %p28 = pneg %p22
      %p29 = scmp.eq.s32.totalorder %s13, 1
      %p30 = por %p28, %p29
      %p31 = scmp.ne.s32.totalorder %s23, %s26
      %p32 = scmp.eq.s32.totalorder %s13, 0
      %p33 = por %p31, %p32
      %p34 = scmp.ne.s32.totalorder %s23, %s26
      %p35 = scmp.eq.s32.totalorder %s18, 1
      %p36 = por %p34, %p35
      %p37 = scmp.ne.s32.totalorder %s26, %s27
      %p38 = scmp.eq.s32.totalorder %s18, 0
      %p39 = por %p37, %p38
      %p40 = scmp.ne.s32.totalorder %s26, %s27
      %p41 = scmp.eq.s32.totalorder %s19, 1
      %p42 = por %p40, %p41
      %p44 = scmp.ne.s32.totalorder %s27, %s43
      %p45 = scmp.eq.s32.totalorder %s19, 0
      %p46 = por %p44, %p45
      %s48 = sadd.s32 %s47, 1
      %p51 = scmp.eq.s32.totalorder %s13, 1
      %p52 = scmp.ne.s32.totalorder %s47, %s49
      %p53 = scmp.eq.s32.totalorder %s13, 0
      %p54 = por %p52, %p53
      %p55 = scmp.ne.s32.totalorder %s47, %s49
      %p56 = scmp.eq.s32.totalorder %s18, 1
      %p57 = por %p55, %p56
      %p58 = scmp.ne.s32.totalorder %s49, %s50
      %p59 = scmp.eq.s32.totalorder %s18, 0
      %p60 = por %p58, %p59
      %p61 = scmp.ne.s32.totalorder %s49, %s50
      %p62 = scmp.eq.s32.totalorder %s19, 1
      %p63 = por %p61, %p62
      %p65 = scmp.ne.s32.totalorder %s50, %s64
      %p66 = scmp.eq.s32.totalorder %s19, 0
      %p67 = por %p65, %p66
      %s68 = ssub.s32 %s13, %s20
      %p69 = scmp.eq.s32.totalorder %s68, 0
      %s71 = sadd.s32 %s70, 1
      %s72 = scalar_select %p69, %s70, %s71
      %p75 = pneg %p69
      %p76 = scmp.eq.s32.totalorder %s13, 1
      %p77 = por %p75, %p76
      %p78 = scmp.ne.s32.totalorder %s70, %s73
      %p79 = scmp.eq.s32.totalorder %s13, 0
      %p80 = por %p78, %p79
      %p81 = scmp.ne.s32.totalorder %s70, %s73
      %p82 = scmp.eq.s32.totalorder %s18, 1
      %p83 = por %p81, %p82
      %p84 = scmp.ne.s32.totalorder %s73, %s74
      %p85 = scmp.eq.s32.totalorder %s18, 0
      %p86 = por %p84, %p85
      %p87 = scmp.ne.s32.totalorder %s73, %s74
      %p88 = scmp.eq.s32.totalorder %s19, 1
      %p89 = por %p87, %p88
      %p91 = scmp.ne.s32.totalorder %s74, %s90
      %p92 = scmp.eq.s32.totalorder %s19, 0
      %p93 = por %p91, %p92
      %s94 = ssub.s32 %s13, %s20
      %p95 = scmp.eq.s32.totalorder %s94, 0
      %s97 = sadd.s32 %s96, 1
      %s98 = scalar_select %p95, %s96, %s97
      %p101 = pneg %p95
      %p102 = scmp.eq.s32.totalorder %s13, 1
      %p103 = por %p101, %p102
      %p104 = scmp.ne.s32.totalorder %s96, %s99
      %p105 = scmp.eq.s32.totalorder %s13, 0
      %p106 = por %p104, %p105
      %p107 = scmp.ne.s32.totalorder %s96, %s99
      %p108 = scmp.eq.s32.totalorder %s18, 1
      %p109 = por %p107, %p108
      %p110 = scmp.ne.s32.totalorder %s99, %s100
      %p111 = scmp.eq.s32.totalorder %s18, 0
      %p112 = por %p110, %p111
      %p113 = scmp.ne.s32.totalorder %s99, %s100
      %p114 = scmp.eq.s32.totalorder %s19, 1
      %p115 = por %p113, %p114
      %p117 = scmp.ne.s32.totalorder %s100, %s116
      %p118 = scmp.eq.s32.totalorder %s19, 0
      %p119 = por %p117, %p118
      %p120 = scmp.le.s32.totalorder 1, %s13
      %p121 = scmp.lt.s32.totalorder %s13, 3
      %p122 = pnand %p120, %p121
      %p123 = pneg %p122
      // Predicated region
      $region9: #{tpu_custom_call.1} parent=5 // pred_check
        _
      $region10: #{tpu_custom_call.1} parent=5 // pred_check_branch
        %125 = sbr.rel (%p122) target = $region12
      $region11: #{tpu_custom_call.1} parent=5 // pred_region
        %s126 = ssub.s32 %s13, 1
        // Predicated region
        $region13: #{tpu_custom_call.1} parent=11 // pred_check
          %p127 = pneg %p60
        $region14: #{tpu_custom_call.1} parent=11 // pred_check_branch
          %129 = sbr.rel (%p127) target = $region16
        $region15: #{tpu_custom_call.1} parent=11 // pred_region
          _
        $region16: #{tpu_custom_call.1} parent=11 // pred_fallthru
          _
      $region12: #{tpu_custom_call.1} parent=5 // pred_fallthru
        _
      %p130 = scmp.lt.s32.totalorder %s13, 2
      // Predicated region
      $region17: #{tpu_custom_call.1} parent=5 // pred_check
        %p131 = pneg %p130
      $region18: #{tpu_custom_call.1} parent=5 // pred_check_branch
        %133 = sbr.rel (%p131) target = $region20
      $region19: #{tpu_custom_call.1} parent=5 // pred_region
        // Predicated region
        $region21: #{tpu_custom_call.1} parent=19 // pred_check
          %p134 = pneg %p33
        $region22: #{tpu_custom_call.1} parent=19 // pred_check_branch
          %136 = sbr.rel (%p134) target = $region24
        $region23: #{tpu_custom_call.1} parent=19 // pred_region
          %p137 = scmp.lt.s32.totalorder %s13, 1
          %s138 = scalar_select %p137, %s13, 1
          %s139 = smul.addr %s138, 3
          %s140 = smul.addr %s139, 8
          %s141 = scalar_lea.vmem %s0, %s140
        $region24: #{tpu_custom_call.1} parent=19 // pred_fallthru
          _
      $region20: #{tpu_custom_call.1} parent=5 // pred_fallthru
        _
      %p142 = scmp.le.s32.totalorder 1, %s13
      %p143 = scmp.lt.s32.totalorder %s13, 3
      %p144 = pnand %p142, %p143
      %p145 = pneg %p144
      // Predicated region
      $region25: #{tpu_custom_call.1} parent=5 // pred_check
        _
      $region26: #{tpu_custom_call.1} parent=5 // pred_check_branch
        %147 = sbr.rel (%p144) target = $region28
      $region27: #{tpu_custom_call.1} parent=5 // pred_region
        %s148 = ssub.s32 %s13, 1
        %p149 = scmp.lt.s32.totalorder %s18, 1
        %s150 = scalar_select %p149, %s18, 1
        %s151 = smul.addr %s150, 3
        %s152 = smul.addr %s151, 8
        %s153 = scalar_lea.vmem %s0, %s152
        %p154 = pneg %p39
        %p155 = pneg %p36
        %p156 = pneg %p60
        %p157 = pneg %p57
        %p158 = pneg %p86
        %p159 = pneg %p83
        %p160 = scmp.lt.s32.totalorder %s18, 1
        %s161 = scalar_select %p160, %s18, 1
        %s162 = smul.addr %s161, 2
        %s163 = smul.addr %s162, 8
        %s164 = scalar_lea.vmem %s2, %s163
        %p165 = pneg %p112
        %p166 = pneg %p109
        %s167 = sand.u32 %s99, 1
        %s168 = scalar_lea.sflag [#allocation3], %s167
        %s169 = sand.u32 %s99, 1
        %s170 = smul.addr %s169, 2
        %s171 = scalar_lea.vmem [#allocation2], %s170
        %p172 = scmp.lt.s32.totalorder %s18, 1
        %s173 = scalar_select %p172, %s18, 1
        %s174 = smul.addr %s173, 3
        %s175 = smul.addr %s174, 8
        %s176 = scalar_lea.vmem %s0, %s175
        %p177 = scmp.lt.s32.totalorder %s18, 1
        %s178 = scalar_select %p177, %s18, 1
        %s179 = smul.addr %s178, 2
        %s180 = smul.addr %s179, 8
        %s181 = scalar_lea.vmem %s2, %s180
        %v182 = vld [vmem:[%s176] sm:$0xff]
        %v183 = vld [vmem:[%s176 + $0x8] sm:$0xff]
        %v184 = vld [vmem:[%s176 + $0x1] sm:$0xff]
        %v185 = vld [vmem:[%s176 + $0x9] sm:$0xff]
        %v186 = vld [vmem:[%s176 + $0x2] sm:$0xff]
        %v187 = vld [vmem:[%s176 + $0xa] sm:$0xff]
        %190 = vrot.lane.b32.xlu0 %v184, 4
        %v191 = vpop.permute.xlu0 %190
        %192 = vrot.lane.b32.xlu0 %v185, 4
        %v193 = vpop.permute.xlu0 %192
        %198 = vrot.lane.b32.xlu0 %v186, 8
        %v199 = vpop.permute.xlu0 %198
        %200 = vrot.lane.b32.xlu0 %v187, 8
        %v201 = vpop.permute.xlu0 %200
        %vm204 = vcmask 31744
        %v205 = vsel %vm204, %v182, %v191
        %v206 = vsel %vm204, %v183, %v193
        %vm207 = vcmask 64512
        %v208 = vsel %vm207, %v205, %v199
        %v209 = vsel %vm207, %v206, %v201
        %v210 = vld [vmem:[%s1] sm:$0xff]
        %v211 = vld [vmem:[%s1 + $0x8] sm:$0xf]
        %vm212 = vcmask 97280
        %v214 = vsel %vm212, %v208, 0
        %v217 = vsel %vm212, %v209, 0
        %vm219 = vcmask 1043456
        %v221 = vsel %vm219, %v211, 0
        %223 = vmatprep.subr.mxu0 0.0
        %224 = vmatpush1.msra.mxu0 %v210
        %225 = vmatprep.subr.mxu0 0.0
        %226 = vmatpush1.msra.mxu0 %v221
        %227 = vmatprep.subr.mxu0 0.0
        %228 = vmatpush1.msra.mxu0 0.0
        %229 = vmatprep.subr.mxu0 0.0
        %230 = vmatpush1.msra.mxu0 0.0
        %231 = vmatprep.subr.mxu0 0.0
        %232 = vmatpush1.msra.mxu0 0.0
        %233 = vmatprep.subr.mxu0 0.0
        %234 = vmatpush1.msra.mxu0 0.0
        %235 = vmatprep.subr.mxu0 0.0
        %236 = vmatpush1.msra.mxu0 0.0
        %237 = vmatprep.subr.mxu0 0.0
        %238 = vmatpush1.msra.mxu0 0.0
        %239 = vmatprep.subr.mxu0 0.0
        %240 = vmatpush1.msra.mxu0 0.0
        %241 = vmatprep.subr.mxu0 0.0
        %242 = vmatpush1.msra.mxu0 0.0
        %243 = vmatprep.subr.mxu0 0.0
        %244 = vmatpush1.msra.mxu0 0.0
        %245 = vmatprep.subr.mxu0 0.0
        %246 = vmatpush1.msra.mxu0 0.0
        %247 = vmatprep.subr.mxu0 0.0
        %248 = vmatpush1.msra.mxu0 0.0
        %249 = vmatprep.subr.mxu0 0.0
        %250 = vmatpush1.msra.mxu0 0.0
        %251 = vmatprep.subr.mxu0 0.0
        %252 = vmatpush1.msra.mxu0 0.0
        %253 = vmatprep.subr.mxu0 0.0
        %254 = vmatpush1.msra.mxu0 0.0
        %255 = vmatprep.subr.mxu0 0.0
        %256 = vmatpush1.msra.mxu0 0.0
        %257 = vmatprep.subr.mxu0 0.0
        %258 = vmatpush1.msra.mxu0 0.0
        %259 = vmatprep.subr.mxu0 0.0
        %260 = vmatpush1.msra.mxu0 0.0
        %261 = vmatprep.subr.mxu0 0.0
        %262 = vmatpush1.msra.mxu0 0.0
        %263 = vmatprep.subr.mxu0 0.0
        %264 = vmatpush1.msra.mxu0 0.0
        %265 = vmatprep.subr.mxu0 0.0
        %266 = vmatpush1.msra.mxu0 0.0
        %267 = vmatprep.subr.mxu0 0.0
        %268 = vmatpush1.msra.mxu0 0.0
        %269 = vmatprep.subr.mxu0 0.0
        %270 = vmatpush1.msra.mxu0 0.0
        %271 = vmatprep.subr.mxu0 0.0
        %272 = vmatpush1.msra.mxu0 0.0
        %273 = vmatprep.subr.mxu0 0.0
        %274 = vmatpush1.msra.mxu0 0.0
        %275 = vmatprep.subr.mxu0 0.0
        %276 = vmatpush1.msra.mxu0 0.0
        %277 = vmatprep.subr.mxu0 0.0
        %278 = vmatpush1.msra.mxu0 0.0
        %279 = vmatprep.subr.mxu0 0.0
        %280 = vmatpush1.msra.mxu0 0.0
        %281 = vmatprep.subr.mxu0 0.0
        %282 = vmatpush1.msra.mxu0 0.0
        %283 = vmatprep.subr.mxu0 0.0
        %284 = vmatpush1.msra.mxu0 0.0
        %285 = vmatprep.subr.mxu0 0.0
        %286 = vmatpush1.msra.mxu0 0.0
        %287 = vmatprep.mubr.f32.mxu0 0.0
        %288 = vmatmul.mubr.f32.gmra.mrb[0].mxu0 %v214
        %v289 = vpop.f32.mrb[0].mxu0
        %v290 = vadd.f32 0.0, %v289
        %v291 = vpop.f32.mrb[0].mxu0
        %292 = vmatprep.mubr.f32.mxu0 0.0
        %293 = vmatmul.mubr.f32.gmra.mrb[0].mxu0 %v217
        %v294 = vpop.f32.mrb[0].mxu0
        %v295 = vadd.f32 0.0, %v294
        %v296 = vpop.f32.mrb[0].mxu0
        %297 = vdwg.mxu0
        %298 = vst.msk [vmem:[%s181] sm:$0xff] %vm204, %v290
        %299 = vst.msk [vmem:[%s181 + $0x8] sm:$0xff] %vm204, %v295
        %v300 = vsel %vm204, %v290, 0.0
        %v301 = vsel %vm204, %v295, 0.0
        %v302 = vadd.f32 %v300, %v301
        %v303 = vrot.slane %v302, 4
        %v304 = vadd.f32 %v302, %v303
        %v305 = vrot.slane %v304, 2
        %v306 = vadd.f32 %v304, %v305
        %v307 = vrot.slane %v306, 1
        %v308 = vadd.f32 %v306, %v307
        %vm309 = vcmask 24576
        %310 = vst.msk [vmem:[%s171] sm:$0x1] %vm309, %v308
        %v311 = vmul.f32 %v290, %v290
        %v312 = vmul.f32 %v295, %v295
        %v313 = vsel %vm204, %v311, 0.0
        %v314 = vsel %vm204, %v312, 0.0
        %v315 = vadd.f32 %v313, %v314
        %v316 = vrot.slane %v315, 4
        %v317 = vadd.f32 %v315, %v316
        %v318 = vrot.slane %v317, 2
        %v319 = vadd.f32 %v317, %v318
        %v320 = vrot.slane %v319, 1
        %v321 = vadd.f32 %v319, %v320
        %322 = vst.msk [vmem:[%s171 + $0x1] sm:$0x1] %vm309, %v321
        %p323 = scmp.lt.s32.totalorder %s18, 1
        %s324 = scalar_select %p323, %s18, 1
        %s325 = smul.addr %s324, 2
        %s326 = smul.addr %s325, 8
        %s327 = scalar_lea.vmem %s2, %s326
        %s328 = sand.u32 %s99, 1
        %s329 = scalar_lea.sflag [#allocation3], %s328
        %s330 = sand.u32 %s99, 1
        %s331 = smul.addr %s330, 2
        %s332 = scalar_lea.vmem [#allocation2], %s331
        // Predicated region
        $region29: #{tpu_custom_call.1} parent=27 // pred_check
          %p333 = pneg %p83
        $region30: #{tpu_custom_call.1} parent=27 // pred_check_branch
          %335 = sbr.rel (%p333) target = $region32
        $region31: #{tpu_custom_call.1} parent=27 // pred_region
          _
        $region32: #{tpu_custom_call.1} parent=27 // pred_fallthru
          _
        // Predicated region
        $region33: #{tpu_custom_call.1} parent=27 // pred_check
          %p336 = pneg %p109
        $region34: #{tpu_custom_call.1} parent=27 // pred_check_branch
          %338 = sbr.rel (%p336) target = $region36
        $region35: #{tpu_custom_call.1} parent=27 // pred_region
          %s340 = ssub.s32 32, 32
          %341 = vsyncadd %s329, %s340
          %s342 = smul.addr %s18, 32
          %s343 = scalar_lea.hbm %s3, %s342
          %s345 = sshll.u32 %s332, 4
          %s346 = int_to_ptr.vmem [resolvable:$true] %s345
          %348 = dma.vmem_to_hbm [thread:$0]  %s346, 32, %s343, %s329
        $region36: #{tpu_custom_call.1} parent=27 // pred_fallthru
          _
      $region28: #{tpu_custom_call.1} parent=5 // pred_fallthru
        _
      %p349 = scmp.le.s32.totalorder 2, %s13
      // Predicated region
      $region37: #{tpu_custom_call.1} parent=5 // pred_check
        %p350 = pneg %p349
      $region38: #{tpu_custom_call.1} parent=5 // pred_check_branch
        %352 = sbr.rel (%p350) target = $region40
      $region39: #{tpu_custom_call.1} parent=5 // pred_region
        %s353 = ssub.s32 %s13, 2
        // Predicated region
        $region41: #{tpu_custom_call.1} parent=39 // pred_check
          %p354 = pneg %p89
        $region42: #{tpu_custom_call.1} parent=39 // pred_check_branch
          %356 = sbr.rel (%p354) target = $region44
        $region43: #{tpu_custom_call.1} parent=39 // pred_region
          %p357 = scmp.lt.s32.totalorder %s19, 1
          %s358 = scalar_select %p357, %s19, 1
          %s359 = smul.addr %s358, 2
          %s360 = smul.addr %s359, 8
          %s361 = scalar_lea.vmem %s2, %s360
        $region44: #{tpu_custom_call.1} parent=39 // pred_fallthru
          _
        // Predicated region
        $region45: #{tpu_custom_call.1} parent=39 // pred_check
          %p362 = pneg %p115
        $region46: #{tpu_custom_call.1} parent=39 // pred_check_branch
          %364 = sbr.rel (%p362) target = $region48
        $region47: #{tpu_custom_call.1} parent=39 // pred_region
          %s365 = sand.u32 %s100, 1
          %s366 = scalar_lea.sflag [#allocation3], %s365
          %s367 = sand.u32 %s100, 1
          %s368 = smul.addr %s367, 2
          %s369 = scalar_lea.vmem [#allocation2], %s368
          %370 = dma.done %s366, 32
        $region48: #{tpu_custom_call.1} parent=39 // pred_fallthru
          _
      $region40: #{tpu_custom_call.1} parent=5 // pred_fallthru
        _
    $region6: #{tpu_custom_call.1} parent=1 // loop_footer
      %s17 = sadd.s32 1, %s13
    $region7: #{tpu_custom_call.1} parent=1 // loop_footer_branch
      %12 = sbr.rel target = $region3
    $region8: #{tpu_custom_call.1} parent=1 // loop_exit
      _
    %371 = vsyncpa [#allocation3], 1
    %s372 = scalar_lea.sflag [#allocation3], 1
    %373 = vsyncpa %s372, 1

</llo_original>
